<compile_context>
chip_gen: v6e
topology: v6e:2x2x1
jax: 0.10.0
libtpu: 0.0.40
codegen_flags: <defaults>
</compile_context>

<pallas_src>
import functools

import jax
import jax.numpy as jnp
from jax import lax
from jax.experimental import pallas as pl
from jax.experimental.pallas import tpu as pltpu


# Crossover between the k-max-pass loop and the 32-step exact bisection.
# Each pass of either variant is one (tm, L) compare/select + one cross-lane
# reduction, so the bisection wins once k exceeds ~32.
_TOPK_MAXPASS_LIMIT = 32


def _round_up(x: int, m: int) -> int:
    return ((x + m - 1) // m) * m


def _f32_order_key(v):
    """Map f32 values to int32 keys whose *signed* order matches float order.

    bits >= 0 (positive floats, +0): key = bits
    bits <  0 (negative floats, -0): key = bits ^ 0x7FFFFFFF
    Monotone, so the k-th largest key is the bit pattern of the k-th largest h.
    """
    b = pltpu.bitcast(v, jnp.int32)
    return jnp.where(b >= 0, b, b ^ jnp.int32(0x7FFFFFFF))


def _sae_kernel(x_ref, b_pre_ref, wenc_ref, benc_ref, wdec_ref, out_ref,
                *, k: int, d_model: int, eps: float, use_bisect: bool):
    x = x_ref[...].astype(jnp.float32)                        # (tm, D)

    # --- preprocess: center + normalize per row (torch.std is unbiased) ---
    mean = jnp.mean(x, axis=-1, keepdims=True)                # (tm, 1)
    var = jnp.sum((x - mean) ** 2, axis=-1, keepdims=True) / (d_model - 1)
    norm = jnp.sqrt(var) + eps                                # (tm, 1)
    # EUP reciprocal (separate issue slot) + one Newton step on the per-row
    # scalar, instead of a (tm, D) VALU divide; numerically ~f32-exact.
    inv = pl.reciprocal(norm, approx=True)
    inv = inv * (2.0 - norm * inv)
    xn = (x - mean) * inv                                     # (tm, D)

    # --- encoder (bf16 operands -> MXU-native, f32 accumulation) ---
    xc = xn - b_pre_ref[...]                                  # (tm, D)
    h = jnp.dot(xc.astype(jnp.bfloat16), wenc_ref[...],
                preferred_element_type=jnp.float32) + benc_ref[...]    # (tm, L)

    # --- top-k threshold ---
    # TODO(synk): exact torch.topk index tie-breaking is not reproduced; rows
    # with duplicates equal to the k-th value may keep >k latents.
    if not use_bisect:
        # Small k: k row-max passes (first pass is just the row max), carried
        # through a fori_loop so only h + thresh stay live.
        row_max = jnp.max(h, axis=-1, keepdims=True)          # pass 1
        def maxpass(_, thr):
            return jnp.max(jnp.where(h < thr, h, -jnp.inf), axis=-1, keepdims=True)
        thresh = lax.fori_loop(0, k - 1, maxpass, row_max, unroll=(k <= 8))
        mask = h >= thresh                                    # (tm, L) bool
    else:
        # Large k: exact bisection for the k-th largest value on
        # order-preserving int32 bit keys.  32 fixed iterations cover the full
        # int32 key range, so the threshold is bit-exact and the cost is
        # independent of k.  All cross-lane reductions are kept in f32.
        key = _f32_order_key(h)                               # (tm, L) int32
        hmax = jnp.max(h, axis=-1, keepdims=True)
        hmin = jnp.min(h, axis=-1, keepdims=True)
        kmax = _f32_order_key(hmax)                           # (tm, 1) int32
        kmin = _f32_order_key(hmin)
        # #elements tied at the row max (handles the ">=k ties at max" corner).
        cnt_max = jnp.sum(jnp.where(h >= hmax, 1.0, 0.0), axis=-1, keepdims=True)

        def bisect(_, carry):
            lo, hi = carry
            # overflow-safe floor((lo + hi) / 2) on int32
            mid = (lo >> 1) + (hi >> 1) + (lo & hi & 1)
            cnt = jnp.sum(jnp.where(key >= mid, 1.0, 0.0), axis=-1, keepdims=True)
            take = cnt >= k
            return jnp.where(take, mid, lo), jnp.where(take, hi, mid)

        # invariant: count(key >= lo) >= k, count(key >= hi) < k (when cnt_max < k)
        lo, _ = lax.fori_loop(0, 32, bisect, (kmin, kmax))
        thresh_key = jnp.where(cnt_max >= k, kmax, lo)
        mask = key >= thresh_key                              # (tm, L) bool

    # --- sparsify: select on a bf16 copy (compare stays f32-exact above) and
    # feed the bf16 result straight into the decoder MXU matmul.  This removes
    # the (tm, L) f32 h_sparse temporary entirely.
    h_relu_bf16 = jnp.maximum(h, 0.0).astype(jnp.bfloat16)    # (tm, L) bf16
    h_sparse = jnp.where(mask, h_relu_bf16, jnp.zeros_like(h_relu_bf16))

    # --- decoder + postprocess (denormalize) ---
    # TODO(synk): for n_latents where the resident bf16 weights overflow the
    # per-TC VMEM budget (v7x, 64 MiB), switch to an L-tiled reduction grid
    # axis (partial top-k merged across L tiles) or a k-row W_dec gather.
    rec = jnp.dot(h_sparse, wdec_ref[...],
                  preferred_element_type=jnp.float32) + b_pre_ref[...]  # (tm, D)
    out_ref[...] = (rec * norm + mean).astype(out_ref.dtype)


def _tpu_vmem_budget_and_kind():
    """(vmem_limit_bytes, device_kind) with generation-aware defaults."""
    kind = ""
    try:
        kind = jax.devices()[0].device_kind.lower()
    except Exception:
        pass
    vmem_cap = None
    try:
        vmem_cap = int(pltpu.get_tpu_info().vmem_capacity_bytes)
    except Exception:
        vmem_cap = None
    if vmem_cap is None:
        # v5e / v6e: 128 MiB per TensorCore; v7x: 64 MiB -> conservative default.
        vmem_cap = 128 * 1024 * 1024 if ("v5" in kind or "v6" in kind) else 64 * 1024 * 1024
    # Leave ~15% headroom for compiler-internal scratch / spill slack.
    return int(0.85 * vmem_cap), kind


def _vmem_footprint(tm, D, L, x_bytes, out_bytes):
    """Rough per-TensorCore VMEM footprint estimate for a given row tile."""
    weights = 2 * D * L * 2                      # resident bf16 W_enc^T + W_dec^T (Buffered(1))
    biases = 2 * 2 * (D + L) * 4                 # double-buffered f32 biases
    io = 2 * tm * D * (x_bytes + out_bytes)      # double-buffered x / out row tiles
    temps = tm * L * 10 + tm * D * 16            # h(f32) + keys/mask + bf16 copy + (tm,D) f32 temps
    return weights + biases + io + temps


def topk_sae_forward(x, b_pre, w_enc, b_enc, w_dec, *, k: int,
                     eps: float = 1e-6, row_tile=None, topk_method: str = "auto"):
    """x: (B, S, D). Returns the reconstruction with the same shape/dtype.

    w_enc: (n_latents, d_model) = encoder.weight, w_dec: (d_model, n_latents) =
    decoder.weight, b_pre: (d_model,), b_enc: (n_latents,).
    """
    B, S, D = x.shape
    L = w_enc.shape[0]
    N = B * S
    assert 1 <= k <= L

    vmem_budget, kind = _tpu_vmem_budget_and_kind()

    # Row tile: 256 fills the v6e/v7x 256-wide MXU M dimension; 128 is enough
    # on v5e (128x128 MXU).  Shrink until the VMEM footprint fits the budget.
    if row_tile is None:
        row_tile = 128 if ("v5 lite" in kind or "v5e" in kind) else 256
    x_bytes = jnp.dtype(x.dtype).itemsize
    tm = max(8, (int(row_tile) // 8) * 8)
    while tm > 8 and _vmem_footprint(tm, D, L, x_bytes, x_bytes) > vmem_budget:
        tm //= 2
    # TODO(synk): if the resident weights alone exceed vmem_budget (huge L on
    # v7x), fall back to an L-tiled reduction grid instead of shrinking tm.
    tm = min(tm, _round_up(N, 8))
    n_pad = _round_up(N, tm)

    # Keep x in its native dtype (the kernel upcasts per tile); zero-padded
    # rows are harmless (mean=0, norm=eps, xn=0) and are sliced off afterwards.
    x2 = x.reshape(N, D)
    if n_pad != N:
        x2 = jnp.pad(x2, ((0, n_pad - N), (0, 0)))

    wenc_t = w_enc.T.astype(jnp.bfloat16)     # (D, L)
    wdec_t = w_dec.T.astype(jnp.bfloat16)     # (L, D)
    b_pre2 = b_pre.reshape(1, D).astype(jnp.float32)
    b_enc2 = b_enc.reshape(1, L).astype(jnp.float32)

    if topk_method == "auto":
        use_bisect = k > _TOPK_MAXPASS_LIMIT
    elif topk_method == "bisect":
        use_bisect = True
    elif topk_method == "maxpass":
        use_bisect = False
    else:
        raise ValueError(f"unknown topk_method: {topk_method!r}")

    kernel = functools.partial(_sae_kernel, k=k, d_model=D, eps=eps,
                               use_bisect=use_bisect)

    cost = pl.CostEstimate(
        flops=4 * n_pad * D * L,                    # two matmuls per row
        transcendentals=2 * n_pad,                  # sqrt + reciprocal per row
        bytes_accessed=(2 * n_pad * D * x_bytes     # x in + out (native dtype)
                        + 2 * D * L * 2             # bf16 weights (resident)
                        + 4 * (D + L)),             # biases
    )

    out = pl.pallas_call(
        kernel,
        out_shape=jax.ShapeDtypeStruct((n_pad, D), x.dtype),
        grid_spec=pltpu.PrefetchScalarGridSpec(
            num_scalar_prefetch=0,
            grid=(n_pad // tm,),
            in_specs=[
                pl.BlockSpec((tm, D), lambda i: (i, 0)),       # x rows (native dtype)
                pl.BlockSpec((1, D), lambda i: (0, 0)),        # b_pre
                pl.BlockSpec((D, L), lambda i: (0, 0),         # W_enc^T (resident)
                             pipeline_mode=pl.Buffered(1)),
                pl.BlockSpec((1, L), lambda i: (0, 0)),        # b_enc
                pl.BlockSpec((L, D), lambda i: (0, 0),         # W_dec^T (resident)
                             pipeline_mode=pl.Buffered(1)),
            ],
            out_specs=pl.BlockSpec((tm, D), lambda i: (i, 0)),
        ),
        compiler_params=pltpu.CompilerParams(
            dimension_semantics=("parallel",),
            vmem_limit_bytes=vmem_budget),
        cost_estimate=cost,
    )(x2, b_pre2, wenc_t, b_enc2, wdec_t)

    return out[:N].reshape(B, S, D)


def _reference_forward(x, b_pre, w_enc, b_enc, w_dec, *, k, eps=1e-6):
    """Pure-JAX reference mirroring the PyTorch module (lax.top_k), with the
    same bf16 matmul-operand casting as the kernel so tolerances stay tight."""
    B, S, D = x.shape
    xf = x.astype(jnp.float32)
    mean = jnp.mean(xf, axis=-1, keepdims=True)
    var = jnp.sum((xf - mean) ** 2, axis=-1, keepdims=True) / (D - 1)
    norm = jnp.sqrt(var) + eps
    xn = ((xf - mean) / norm).reshape(-1, D)
    xc = xn - b_pre.astype(jnp.float32)
    h = jnp.dot(xc.astype(jnp.bfloat16), w_enc.T.astype(jnp.bfloat16),
                preferred_element_type=jnp.float32) + b_enc
    vals, idx = lax.top_k(h, k)
    vals = jnp.maximum(vals, 0.0)
    rows = jnp.arange(h.shape[0])[:, None]
    h_sparse = jnp.zeros_like(h).at[rows, idx].set(vals)
    rec = jnp.dot(h_sparse.astype(jnp.bfloat16), w_dec.T.astype(jnp.bfloat16),
                  preferred_element_type=jnp.float32) + b_pre
    rec = rec.reshape(B, S, D)
    return rec * norm + mean


def init_params(key, d_model, n_latents, dtype=jnp.float32):
    """Deterministic synthetic init mirroring the module's __init__."""
    k1, k2, k3 = jax.random.split(key, 3)
    # orthogonal-style init for encoder weight (n_latents, d_model)
    a = jax.random.normal(k1, (n_latents, d_model), dtype=jnp.float32)
    q, _ = jnp.linalg.qr(a)                      # (n_latents, d_model)
    w_enc = q.astype(dtype)
    b_enc = (0.01 * jax.random.normal(k2, (n_latents,))).astype(dtype)
    # decoder.weight = encoder.weight.T, then normalize along dim=1
    w_dec = w_enc.T                              # (d_model, n_latents)
    w_dec = w_dec / jnp.linalg.norm(w_dec, axis=1, keepdims=True)
    b_pre = (0.05 * jax.random.normal(k3, (d_model,))).astype(dtype)
    return b_pre, w_enc, b_enc, w_dec.astype(dtype)


if __name__ == "__main__":
    d_model, n_latents = 128, 256
    batch, seq = 2, 8

    key = jax.random.PRNGKey(0)
    kx, kp = jax.random.split(key)
    x = jax.random.normal(kx, (batch, seq, d_model), dtype=jnp.float32)
    b_pre, w_enc, b_enc, w_dec = init_params(kp, d_model, n_latents)

    # small-k path (fori_loop of row-max passes)
    out = topk_sae_forward(x, b_pre, w_enc, b_enc, w_dec, k=4)
    out = jax.block_until_ready(out)
    ref = _reference_forward(x, b_pre, w_enc, b_enc, w_dec, k=4)
    assert out.shape == (batch, seq, d_model)
    # bf16 matmul operands -> looser tolerance than a pure-f32 comparison.
    assert jnp.allclose(out, ref, atol=1e-2, rtol=1e-2), "maxpass mismatch vs reference"

    # large-k path (exact bisection threshold search), forced for coverage
    out2 = topk_sae_forward(x, b_pre, w_enc, b_enc, w_dec, k=24, topk_method="bisect")
    out2 = jax.block_until_ready(out2)
    ref2 = _reference_forward(x, b_pre, w_enc, b_enc, w_dec, k=24)
    assert jnp.allclose(out2, ref2, atol=1e-2, rtol=1e-2), "bisect mismatch vs reference"

    print("KERNEL_OK")
</pallas_src>

<mosaic_0001>
module attributes {stable_mosaic.version = 11 : i64} {
  func.func @_sae_kernel(%arg0: i32, %arg1: memref<16x128xf32, #tpu.memory_space<vmem>>, %arg2: memref<1x128xf32, #tpu.memory_space<vmem>>, %arg3: memref<128x256xbf16, #tpu.memory_space<vmem>>, %arg4: memref<1x256xf32, #tpu.memory_space<vmem>>, %arg5: memref<256x128xbf16, #tpu.memory_space<vmem>>, %arg6: memref<16x128xf32, #tpu.memory_space<vmem>>) attributes {dimension_semantics = [#tpu.dimension_semantics<parallel>], iteration_bounds = array<i64: 1>, scalar_prefetch = 0 : i64, scratch_operands = 0 : i64, tpu.core_type = #tpu.core_type<tc>, window_params = [{transform_indices = @transform_0, window_bounds = array<i64: 16, 128>}, {pipeline_mode = #tpu.pipeline_mode<synchronous>, transform_indices = @transform_1, window_bounds = array<i64: 1, 128>}, {pipeline_mode = #tpu.pipeline_mode<synchronous>, transform_indices = @transform_2, window_bounds = array<i64: 128, 256>}, {pipeline_mode = #tpu.pipeline_mode<synchronous>, transform_indices = @transform_3, window_bounds = array<i64: 1, 256>}, {pipeline_mode = #tpu.pipeline_mode<synchronous>, transform_indices = @transform_4, window_bounds = array<i64: 256, 128>}, {transform_indices = @transform_5, window_bounds = array<i64: 16, 128>}]} {
    %c0 = arith.constant 0 : index
    %c0_0 = arith.constant 0 : index
    %0 = vector.load %arg1[%c0, %c0_0] : memref<16x128xf32, #tpu.memory_space<vmem>>, vector<16x128xf32>
    %cst = arith.constant dense<0.000000e+00> : vector<16xf32>
    %1 = vector.multi_reduction <add>, %0, %cst [1] : vector<16x128xf32> to vector<16xf32>
    %2 = vector.shape_cast %1 : vector<16xf32> to vector<16x1xf32>
    %cst_1 = arith.constant 1.280000e+02 : f32
    %3 = vector.broadcast %cst_1 : f32 to vector<16x1xf32>
    %4 = arith.divf %2, %3 : vector<16x1xf32>
    %5 = vector.broadcast %4 : vector<16x1xf32> to vector<16x128xf32>
    %6 = arith.subf %0, %5 : vector<16x128xf32>
    %7 = arith.mulf %6, %6 : vector<16x128xf32>
    %cst_2 = arith.constant dense<0.000000e+00> : vector<16xf32>
    %8 = vector.multi_reduction <add>, %7, %cst_2 [1] : vector<16x128xf32> to vector<16xf32>
    %9 = vector.shape_cast %8 : vector<16xf32> to vector<16x1xf32>
    %cst_3 = arith.constant 1.270000e+02 : f32
    %10 = vector.broadcast %cst_3 : f32 to vector<16x1xf32>
    %11 = arith.divf %9, %10 : vector<16x1xf32>
    %12 = math.sqrt %11 : vector<16x1xf32>
    %cst_4 = arith.constant 9.99999997E-7 : f32
    %13 = vector.broadcast %cst_4 : f32 to vector<16x1xf32>
    %14 = arith.addf %12, %13 : vector<16x1xf32>
    %15 = tpu.reciprocal %14 {approx = true} : vector<16x1xf32> -> vector<16x1xf32>
    %16 = arith.mulf %14, %15 : vector<16x1xf32>
    %cst_5 = arith.constant 2.000000e+00 : f32
    %17 = vector.broadcast %cst_5 : f32 to vector<16x1xf32>
    %18 = arith.subf %17, %16 : vector<16x1xf32>
    %19 = arith.mulf %15, %18 : vector<16x1xf32>
    %20 = vector.broadcast %4 : vector<16x1xf32> to vector<16x128xf32>
    %21 = arith.subf %0, %20 : vector<16x128xf32>
    %22 = vector.broadcast %19 : vector<16x1xf32> to vector<16x128xf32>
    %23 = arith.mulf %21, %22 : vector<16x128xf32>
    %c0_6 = arith.constant 0 : index
    %c0_7 = arith.constant 0 : index
    %24 = vector.load %arg2[%c0_6, %c0_7] : memref<1x128xf32, #tpu.memory_space<vmem>>, vector<1x128xf32>
    %25 = vector.broadcast %24 : vector<1x128xf32> to vector<16x128xf32>
    %26 = arith.subf %23, %25 : vector<16x128xf32>
    %27 = arith.truncf %26 : vector<16x128xf32> to vector<16x128xbf16>
    %c0_8 = arith.constant 0 : index
    %c0_9 = arith.constant 0 : index
    %28 = vector.load %arg3[%c0_8, %c0_9] : memref<128x256xbf16, #tpu.memory_space<vmem>>, vector<128x256xbf16>
    %cst_10 = arith.constant dense<0.000000e+00> : vector<16x256xf32>
    %29 = tpu.matmul %27, %28, %cst_10 {dimension_numbers = #tpu.dot_dimension_numbers<[1], [0], [0], [1], [0, 0, 1, 1], [], []>} : vector<16x128xbf16>, vector<128x256xbf16>, vector<16x256xf32> -> vector<16x256xf32>
    %c0_11 = arith.constant 0 : index
    %c0_12 = arith.constant 0 : index
    %30 = vector.load %arg4[%c0_11, %c0_12] : memref<1x256xf32, #tpu.memory_space<vmem>>, vector<1x256xf32>
    %31 = vector.broadcast %30 : vector<1x256xf32> to vector<16x256xf32>
    %32 = arith.addf %29, %31 : vector<16x256xf32>
    %cst_13 = arith.constant dense<0xFF800000> : vector<16xf32>
    %33 = vector.multi_reduction <maximumf>, %32, %cst_13 [1] : vector<16x256xf32> to vector<16xf32>
    %34 = vector.shape_cast %33 : vector<16xf32> to vector<16x1xf32>
    %c0_i32 = arith.constant 0 : i32
    %35 = vector.broadcast %34 : vector<16x1xf32> to vector<16x256xf32>
    %36 = arith.cmpf olt, %32, %35 : vector<16x256xf32>
    %cst_14 = arith.constant 0xFF800000 : f32
    %37 = vector.broadcast %cst_14 : f32 to vector<16x256xf32>
    %38 = arith.select %36, %32, %37 : vector<16x256xi1>, vector<16x256xf32>
    %cst_15 = arith.constant dense<0xFF800000> : vector<16xf32>
    %39 = vector.multi_reduction <maximumf>, %38, %cst_15 [1] : vector<16x256xf32> to vector<16xf32>
    %40 = vector.shape_cast %39 : vector<16xf32> to vector<16x1xf32>
    %c1_i32 = arith.constant 1 : i32
    %41 = vector.broadcast %40 : vector<16x1xf32> to vector<16x256xf32>
    %42 = arith.cmpf olt, %32, %41 : vector<16x256xf32>
    %cst_16 = arith.constant 0xFF800000 : f32
    %43 = vector.broadcast %cst_16 : f32 to vector<16x256xf32>
    %44 = arith.select %42, %32, %43 : vector<16x256xi1>, vector<16x256xf32>
    %cst_17 = arith.constant dense<0xFF800000> : vector<16xf32>
    %45 = vector.multi_reduction <maximumf>, %44, %cst_17 [1] : vector<16x256xf32> to vector<16xf32>
    %46 = vector.shape_cast %45 : vector<16xf32> to vector<16x1xf32>
    %c2_i32 = arith.constant 2 : i32
    %47 = vector.broadcast %46 : vector<16x1xf32> to vector<16x256xf32>
    %48 = arith.cmpf olt, %32, %47 : vector<16x256xf32>
    %cst_18 = arith.constant 0xFF800000 : f32
    %49 = vector.broadcast %cst_18 : f32 to vector<16x256xf32>
    %50 = arith.select %48, %32, %49 : vector<16x256xi1>, vector<16x256xf32>
    %cst_19 = arith.constant dense<0xFF800000> : vector<16xf32>
    %51 = vector.multi_reduction <maximumf>, %50, %cst_19 [1] : vector<16x256xf32> to vector<16xf32>
    %52 = vector.shape_cast %51 : vector<16xf32> to vector<16x1xf32>
    %53 = vector.broadcast %52 : vector<16x1xf32> to vector<16x256xf32>
    %54 = arith.cmpf oge, %32, %53 : vector<16x256xf32>
    %cst_20 = arith.constant 0.000000e+00 : f32
    %55 = vector.broadcast %cst_20 : f32 to vector<16x256xf32>
    %56 = arith.maximumf %32, %55 : vector<16x256xf32>
    %57 = arith.truncf %56 : vector<16x256xf32> to vector<16x256xbf16>
    %cst_21 = arith.constant 0.000000e+00 : bf16
    %58 = vector.broadcast %cst_21 : bf16 to vector<16x256xbf16>
    %59 = arith.select %54, %57, %58 : vector<16x256xi1>, vector<16x256xbf16>
    %c0_22 = arith.constant 0 : index
    %c0_23 = arith.constant 0 : index
    %60 = vector.load %arg5[%c0_22, %c0_23] : memref<256x128xbf16, #tpu.memory_space<vmem>>, vector<256x128xbf16>
    %cst_24 = arith.constant dense<0.000000e+00> : vector<16x128xf32>
    %61 = tpu.matmul %59, %60, %cst_24 {dimension_numbers = #tpu.dot_dimension_numbers<[1], [0], [0], [1], [0, 0, 1, 1], [], []>} : vector<16x256xbf16>, vector<256x128xbf16>, vector<16x128xf32> -> vector<16x128xf32>
    %c0_25 = arith.constant 0 : index
    %c0_26 = arith.constant 0 : index
    %62 = vector.load %arg2[%c0_25, %c0_26] : memref<1x128xf32, #tpu.memory_space<vmem>>, vector<1x128xf32>
    %63 = vector.broadcast %62 : vector<1x128xf32> to vector<16x128xf32>
    %64 = arith.addf %61, %63 : vector<16x128xf32>
    %65 = vector.broadcast %14 : vector<16x1xf32> to vector<16x128xf32>
    %66 = arith.mulf %64, %65 : vector<16x128xf32>
    %67 = vector.broadcast %4 : vector<16x1xf32> to vector<16x128xf32>
    %68 = arith.addf %66, %67 : vector<16x128xf32>
    %c0_27 = arith.constant 0 : index
    %c0_28 = arith.constant 0 : index
    %69 = vector.load %arg6[%c0_27, %c0_28] : memref<16x128xf32, #tpu.memory_space<vmem>>, vector<16x128xf32>
    tpu.vector_store %arg6[%c0_27, %c0_28], %68 {strides = array<i32>} : memref<16x128xf32, #tpu.memory_space<vmem>>, vector<16x128xf32>,
    return
  }
  func.func @transform_0(%arg0: i32) -> (i32, i32) {
    %c0_i32 = arith.constant 0 : i32
    %c0_i32_0 = arith.constant 0 : i32
    return %arg0, %c0_i32 : i32, i32
  }
  func.func @transform_1(%arg0: i32) -> (i32, i32) {
    %c0_i32 = arith.constant 0 : i32
    %c0_i32_0 = arith.constant 0 : i32
    %c0_i32_1 = arith.constant 0 : i32
    return %c0_i32, %c0_i32_0 : i32, i32
  }
  func.func @transform_2(%arg0: i32) -> (i32, i32) {
    %c0_i32 = arith.constant 0 : i32
    %c0_i32_0 = arith.constant 0 : i32
    %c0_i32_1 = arith.constant 0 : i32
    return %c0_i32, %c0_i32_0 : i32, i32
  }
  func.func @transform_3(%arg0: i32) -> (i32, i32) {
    %c0_i32 = arith.constant 0 : i32
    %c0_i32_0 = arith.constant 0 : i32
    %c0_i32_1 = arith.constant 0 : i32
    return %c0_i32, %c0_i32_0 : i32, i32
  }
  func.func @transform_4(%arg0: i32) -> (i32, i32) {
    %c0_i32 = arith.constant 0 : i32
    %c0_i32_0 = arith.constant 0 : i32
    %c0_i32_1 = arith.constant 0 : i32
    return %c0_i32, %c0_i32_0 : i32, i32
  }
  func.func @transform_5(%arg0: i32) -> (i32, i32) {
    %c0_i32 = arith.constant 0 : i32
    %c0_i32_0 = arith.constant 0 : i32
    return %arg0, %c0_i32 : i32, i32
  }
}

</mosaic_0001>

<llo_original>
// kernel: tpu_custom_call.1
$region0: #{tpu_custom_call.1}
  #allocation0 [shape = 'u32[]', space=smem, size = 0x4, offset = 0x4, fixed_abs, tag = 'smem constant byte address 0x4 - core index']
  #allocation1 [shape = 'u32[144,128]{1,0:T(1,128)}', space=vmem, size = 0x12000, scoped, tag = 'internal scratch']
  %s0 = inlined_call_operand.hbm [shape: f32[16,128], index: 0, kind: input, shape index: {}]
  %s1 = inlined_call_operand.vmem [shape: f32[1,128], index: 1, kind: input, shape index: {}]
  %s2 = inlined_call_operand.hbm [shape: bf16[128,256], index: 2, kind: input, shape index: {}]
  %s3 = inlined_call_operand.vmem [shape: f32[1,256], index: 3, kind: input, shape index: {}]
  %s4 = inlined_call_operand.hbm [shape: bf16[256,128], index: 4, kind: input, shape index: {}]
  %s5 = inlined_call_operand.hbm [shape: f32[16,128], index: 5, kind: output, shape index: {}]
  %s6 = sld [smem:[#allocation0]]
  $region42: #{tpu_custom_call.1} parent=0
    _
  %s8 = ssub.s32 1, %s6
  %s9 = scalar_select 0, %s8, %s6
  $region1: #{tpu_custom_call.1} parent=0
    #allocation2 [shape = 'u8[8192]{0}', space=vmem, size = 0x2000, scoped, tag = 'input window, operand 0, single buffered']
    #allocation3 [shape = 's32[1]{0}', space=sflag, size = 0x4, scoped, tag = 'scoped memory for tpu_custom_call.1']
    #allocation4 [shape = 's32[1]{0}', space=sflag, size = 0x4, scoped, tag = 'scoped memory for tpu_custom_call.1']
    #allocation5 [shape = 'u8[65536]{0}', space=vmem, size = 0x10000, scoped, tag = 'input window, operand 2, single buffered']
    #allocation6 [shape = 's32[1]{0}', space=sflag, size = 0x4, scoped, tag = 'scoped memory for tpu_custom_call.1']
    #allocation7 [shape = 'u8[65536]{0}', space=vmem, size = 0x10000, scoped, tag = 'input window, operand 4, single buffered']
    #allocation8 [shape = 'u8[8192]{0}', space=vmem, size = 0x2000, scoped, tag = 'output window, operand 0, single buffered']
    %10 = vsyncpa [#allocation3], 0
    %11 = vsyncpa [#allocation6], 0
    %12 = vsyncpa [#allocation4], 0
    // Predicated region
    $region2: #{tpu_custom_call.1} parent=1 // pred_check
      _
    $region3: #{tpu_custom_call.1} parent=1 // pred_check_branch
      %14 = sbr.rel (0) target = $region5
    $region4: #{tpu_custom_call.1} parent=1 // pred_region
      %s16 = ssub.s32 256, 256
      %17 = vsyncadd [#allocation3], %s16
      %s18 = sshll.u32 [#allocation2], 4
      %s19 = int_to_ptr.vmem [resolvable:$true] %s18
      %24 = dma.hbm_to_vmem [thread:$0]  %s0, 256, %s19, [#allocation3], 128, 128, 8
    $region5: #{tpu_custom_call.1} parent=1 // pred_fallthru
      _
    // Predicated region
    $region6: #{tpu_custom_call.1} parent=1 // pred_check
      _
    $region7: #{tpu_custom_call.1} parent=1 // pred_check_branch
      %26 = sbr.rel (0) target = $region9
    $region8: #{tpu_custom_call.1} parent=1 // pred_region
      _
    $region9: #{tpu_custom_call.1} parent=1 // pred_fallthru
      _
    // Predicated region
    $region10: #{tpu_custom_call.1} parent=1 // pred_check
      _
    $region11: #{tpu_custom_call.1} parent=1 // pred_check_branch
      %28 = sbr.rel (0) target = $region13
    $region12: #{tpu_custom_call.1} parent=1 // pred_region
      %s30 = ssub.s32 2048, 2048
      %31 = vsyncadd [#allocation6], %s30
      %s32 = sshll.u32 [#allocation5], 4
      %s33 = int_to_ptr.vmem [resolvable:$true] %s32
      %38 = dma.hbm_to_vmem [thread:$0]  %s2, 2048, %s33, [#allocation6], 128, 128, 8
    $region13: #{tpu_custom_call.1} parent=1 // pred_fallthru
      _
    // Predicated region
    $region14: #{tpu_custom_call.1} parent=1 // pred_check
      _
    $region15: #{tpu_custom_call.1} parent=1 // pred_check_branch
      %40 = sbr.rel (0) target = $region17
    $region16: #{tpu_custom_call.1} parent=1 // pred_region
      _
    $region17: #{tpu_custom_call.1} parent=1 // pred_fallthru
      _
    // Predicated region
    $region18: #{tpu_custom_call.1} parent=1 // pred_check
      _
    $region19: #{tpu_custom_call.1} parent=1 // pred_check_branch
      %42 = sbr.rel (0) target = $region21
    $region20: #{tpu_custom_call.1} parent=1 // pred_region
      %s44 = ssub.s32 2048, 2048
      %45 = vsyncadd [#allocation6], %s44
      %s46 = sshll.u32 [#allocation7], 4
      %s47 = int_to_ptr.vmem [resolvable:$true] %s46
      %52 = dma.hbm_to_vmem [thread:$0]  %s4, 2048, %s47, [#allocation6], 64, 64, 4
    $region21: #{tpu_custom_call.1} parent=1 // pred_fallthru
      _
    // Predicated region
    $region22: #{tpu_custom_call.1} parent=1 // pred_check
      _
    $region23: #{tpu_custom_call.1} parent=1 // pred_check_branch
      %54 = sbr.rel (0) target = $region25
    $region24: #{tpu_custom_call.1} parent=1 // pred_region
      %55 = dma.done [#allocation3], 256
    $region25: #{tpu_custom_call.1} parent=1 // pred_fallthru
      _
    // Predicated region
    $region26: #{tpu_custom_call.1} parent=1 // pred_check
      _
    $region27: #{tpu_custom_call.1} parent=1 // pred_check_branch
      %57 = sbr.rel (0) target = $region29
    $region28: #{tpu_custom_call.1} parent=1 // pred_region
      %58 = dma.done [#allocation6], 2048
    $region29: #{tpu_custom_call.1} parent=1 // pred_fallthru
      _
    // Predicated region
    $region30: #{tpu_custom_call.1} parent=1 // pred_check
      _
    $region31: #{tpu_custom_call.1} parent=1 // pred_check_branch
      %60 = sbr.rel (0) target = $region33
    $region32: #{tpu_custom_call.1} parent=1 // pred_region
      %61 = dma.done [#allocation6], 2048
    $region33: #{tpu_custom_call.1} parent=1 // pred_fallthru
      _
    %v63 = vld [vmem:[#allocation2] sm:$0xff]
    %v64 = vld [vmem:[#allocation2 + $0x8] sm:$0xff]
    %65 = vadd.xlane.f32.xlu0 %v63
    %v66 = vpop.xlane.xlu0 %65
    %67 = vadd.xlane.f32.xlu0 %v64
    %v68 = vpop.xlane.xlu0 %67
    %v69 = vrcp.pop 128.0
    %v70 = vmul.f32 %v66, %v69
    %v71 = vmul.f32 %v68, %v69
    %v72 = vsub.f32 %v63, %v70
    %v73 = vsub.f32 %v64, %v71
    %v74 = vmul.f32 %v72, %v72
    %v75 = vmul.f32 %v73, %v73
    %76 = vadd.xlane.f32.xlu0 %v74
    %v77 = vpop.xlane.xlu0 %76
    %78 = vadd.xlane.f32.xlu0 %v75
    %v79 = vpop.xlane.xlu0 %78
    %v80 = vrcp.pop 127.0
    %v81 = vmul.f32 %v77, %v80
    %v82 = vmul.f32 %v79, %v80
    %v83 = vrsqrt.pop %v81
    %v84 = vmul.f32 %v81, %v83
    %vm85 = vcmp.eq.f32.partialorder %v81, inf
    %v86 = vsel %vm85, %v81, %v84
    %vm87 = vcmp.eq.f32.partialorder %v81, 0.0
    %v88 = vand.u32 %v81, 2147483648
    %v89 = vsel %vm87, %v88, %v86
    %v90 = vrsqrt.pop %v82
    %v91 = vmul.f32 %v82, %v90
    %vm92 = vcmp.eq.f32.partialorder %v82, inf
    %v93 = vsel %vm92, %v82, %v91
    %vm94 = vcmp.eq.f32.partialorder %v82, 0.0
    %v95 = vand.u32 %v82, 2147483648
    %v96 = vsel %vm94, %v95, %v93
    %v97 = vadd.f32 %v89, 1e-06
    %v98 = vadd.f32 %v96, 1e-06
    %v99 = vrcp.pop %v97
    %v100 = vrcp.pop %v98
    %v101 = vmul.f32 %v97, %v99
    %v102 = vmul.f32 %v98, %v100
    %v103 = vsub.f32 2.0, %v101
    %v104 = vsub.f32 2.0, %v102
    %v105 = vmul.f32 %v99, %v103
    %v106 = vmul.f32 %v100, %v104
    %v107 = vmul.f32 %v72, %v105
    %v108 = vmul.f32 %v73, %v106
    %v109 = vld [vmem:[%s1] sm:$0x1]
    %v111 = vlaneseq
    %v112 = vshrl.u32 %v111, 7
    %v113 = vsub.s32 0, %v112
    %v114 = vrot.slane %v109, %v113
    %v116 = vsub.f32 %v107, %v114
    %v117 = vsub.f32 %v108, %v114
    %v118 = vpack.c.bf16 %v117, %v116
    %v119 = vld [vmem:[#allocation5] sm:$0xff]
    %v120 = vld [vmem:[#allocation5 + $0x8] sm:$0xff]
    %v121 = vld [vmem:[#allocation5 + $0x10] sm:$0xff]
    %v122 = vld [vmem:[#allocation5 + $0x18] sm:$0xff]
    %v123 = vld [vmem:[#allocation5 + $0x20] sm:$0xff]
    %v124 = vld [vmem:[#allocation5 + $0x28] sm:$0xff]
    %v125 = vld [vmem:[#allocation5 + $0x30] sm:$0xff]
    %v126 = vld [vmem:[#allocation5 + $0x38] sm:$0xff]
    %v127 = vld [vmem:[#allocation5 + $0x40] sm:$0xff]
    %v128 = vld [vmem:[#allocation5 + $0x48] sm:$0xff]
    %v129 = vld [vmem:[#allocation5 + $0x50] sm:$0xff]
    %v130 = vld [vmem:[#allocation5 + $0x58] sm:$0xff]
    %v131 = vld [vmem:[#allocation5 + $0x60] sm:$0xff]
    %v132 = vld [vmem:[#allocation5 + $0x68] sm:$0xff]
    %v133 = vld [vmem:[#allocation5 + $0x70] sm:$0xff]
    %v134 = vld [vmem:[#allocation5 + $0x78] sm:$0xff]
    %v135 = vld [vmem:[%s3] sm:$0x3]
    %v137 = vlaneseq
    %v138 = vshrl.u32 %v137, 7
    %v139 = vsub.s32 0, %v138
    %v140 = vrot.slane %v135, %v139
    %v141 = vlaneseq
    %v142 = vshrl.u32 %v141, 7
    %v143 = vsub.s32 1, %v142
    %v144 = vrot.slane %v135, %v143
    %v163 = vunpack.c.l.b16 %v119
    %v164 = vunpack.c.h.b16 %v119
    %v165 = vunpack.c.l.b16 %v120
    %v166 = vunpack.c.h.b16 %v120
    %v167 = vunpack.c.l.b16 %v121
    %v168 = vunpack.c.h.b16 %v121
    %v169 = vunpack.c.l.b16 %v122
    %v170 = vunpack.c.h.b16 %v122
    %v171 = vunpack.c.l.b16 %v123
    %v172 = vunpack.c.h.b16 %v123
    %v173 = vunpack.c.l.b16 %v124
    %v174 = vunpack.c.h.b16 %v124
    %v175 = vunpack.c.l.b16 %v125
    %v176 = vunpack.c.h.b16 %v125
    %v177 = vunpack.c.l.b16 %v126
    %v178 = vunpack.c.h.b16 %v126
    %v179 = vunpack.c.l.b16 %v127
    %v180 = vunpack.c.h.b16 %v127
    %v181 = vunpack.c.l.b16 %v128
    %v182 = vunpack.c.h.b16 %v128
    %v183 = vunpack.c.l.b16 %v129
    %v184 = vunpack.c.h.b16 %v129
    %v185 = vunpack.c.l.b16 %v130
    %v186 = vunpack.c.h.b16 %v130
    %v187 = vunpack.c.l.b16 %v131
    %v188 = vunpack.c.h.b16 %v131
    %v189 = vunpack.c.l.b16 %v132
    %v190 = vunpack.c.h.b16 %v132
    %v191 = vunpack.c.l.b16 %v133
    %v192 = vunpack.c.h.b16 %v133
    %v193 = vunpack.c.l.b16 %v134
    %v194 = vunpack.c.h.b16 %v134
    %v195 = vpack.c.b16 %v165, %v163
    %v196 = vpack.c.b16 %v166, %v164
    %v197 = vpack.c.b16 %v169, %v167
    %v198 = vpack.c.b16 %v170, %v168
    %v199 = vpack.c.b16 %v173, %v171
    %v200 = vpack.c.b16 %v174, %v172
    %v201 = vpack.c.b16 %v177, %v175
    %v202 = vpack.c.b16 %v178, %v176
    %v203 = vpack.c.b16 %v181, %v179
    %v204 = vpack.c.b16 %v182, %v180
    %v205 = vpack.c.b16 %v185, %v183
    %v206 = vpack.c.b16 %v186, %v184
    %v207 = vpack.c.b16 %v189, %v187
    %v208 = vpack.c.b16 %v190, %v188
    %v209 = vpack.c.b16 %v193, %v191
    %v210 = vpack.c.b16 %v194, %v192
    %227 = vmatprep.subr.bf16.mxu0 %v210
    %228 = vmatpush1.bf16.msra.mxu0 %v209
    %229 = vmatprep.subr.bf16.mxu0 %v208
    %230 = vmatpush1.bf16.msra.mxu0 %v207
    %231 = vmatprep.subr.bf16.mxu0 %v206
    %232 = vmatpush1.bf16.msra.mxu0 %v205
    %233 = vmatprep.subr.bf16.mxu0 %v204
    %234 = vmatpush1.bf16.msra.mxu0 %v203
    %235 = vmatprep.subr.bf16.mxu0 %v202
    %236 = vmatpush1.bf16.msra.mxu0 %v201
    %237 = vmatprep.subr.bf16.mxu0 %v200
    %238 = vmatpush1.bf16.msra.mxu0 %v199
    %239 = vmatprep.subr.bf16.mxu0 %v198
    %240 = vmatpush1.bf16.msra.mxu0 %v197
    %241 = vmatprep.subr.bf16.mxu0 %v196
    %242 = vmatpush1.bf16.msra.mxu0 %v195
    %243 = vmatprep.subr.bf16.mxu0 0
    %244 = vmatpush2.bf16.msra.mxu0 0
    %245 = vmatprep.subr.bf16.mxu0 0
    %246 = vmatpush2.bf16.msra.mxu0 0
    %247 = vmatprep.subr.bf16.mxu0 0
    %248 = vmatpush2.bf16.msra.mxu0 0
    %249 = vmatprep.subr.bf16.mxu0 0
    %250 = vmatpush2.bf16.msra.mxu0 0
    %251 = vmatprep.subr.bf16.mxu0 0
    %252 = vmatpush2.bf16.msra.mxu0 0
    %253 = vmatprep.subr.bf16.mxu0 0
    %254 = vmatpush2.bf16.msra.mxu0 0
    %255 = vmatprep.subr.bf16.mxu0 0
    %256 = vmatpush2.bf16.msra.mxu0 0
    %257 = vmatprep.subr.bf16.mxu0 0
    %258 = vmatpush2.bf16.msra.mxu0 0
    %259 = vmatprep.mubr.bf16.mxu0 0
    %260 = vmatmul.mubr.bf16.gmra.mxu0 %v118
    %v261 = vpop.f32.mrf.mxu0
    %v262 = vadd.f32 %v140, %v261
    %v263 = vpop.f32.mrf.mxu0
    %v264 = vadd.f32 %v144, %v263
    %v265 = vpop.f32.mrf.mxu0
    %v266 = vadd.f32 %v140, %v265
    %v267 = vpop.f32.mrf.mxu0
    %v268 = vadd.f32 %v144, %v267
    %269 = vdwg.mxu0
    %v270 = vmax.f32 %v262, %v264
    %271 = vmax.xlane.f32.xlu0 %v270
    %v272 = vpop.xlane.xlu0 %271
    %v273 = vmax.f32 %v266, %v268
    %274 = vmax.xlane.f32.xlu0 %v273
    %v275 = vpop.xlane.xlu0 %274
    %vm276 = vcmp.lt.f32.partialorder %v262, %v272
    %vm277 = vcmp.lt.f32.partialorder %v264, %v272
    %vm278 = vcmp.lt.f32.partialorder %v266, %v275
    %vm279 = vcmp.lt.f32.partialorder %v268, %v275
    %v280 = vsel %vm276, %v262, -inf
    %v281 = vsel %vm277, %v264, -inf
    %v282 = vsel %vm278, %v266, -inf
    %v283 = vsel %vm279, %v268, -inf
    %v284 = vmax.f32 %v280, %v281
    %285 = vmax.xlane.f32.xlu0 %v284
    %v286 = vpop.xlane.xlu0 %285
    %v287 = vmax.f32 %v282, %v283
    %288 = vmax.xlane.f32.xlu0 %v287
    %v289 = vpop.xlane.xlu0 %288
    %vm290 = vcmp.lt.f32.partialorder %v262, %v286
    %vm291 = vcmp.lt.f32.partialorder %v264, %v286
    %vm292 = vcmp.lt.f32.partialorder %v266, %v289
    %vm293 = vcmp.lt.f32.partialorder %v268, %v289
    %v294 = vsel %vm290, %v262, -inf
    %v295 = vsel %vm291, %v264, -inf
    %v296 = vsel %vm292, %v266, -inf
    %v297 = vsel %vm293, %v268, -inf
    %v298 = vmax.f32 %v294, %v295
    %299 = vmax.xlane.f32.xlu0 %v298
    %v300 = vpop.xlane.xlu0 %299
    %v301 = vmax.f32 %v296, %v297
    %302 = vmax.xlane.f32.xlu0 %v301
    %v303 = vpop.xlane.xlu0 %302
    %vm304 = vcmp.lt.f32.partialorder %v262, %v300
    %vm305 = vcmp.lt.f32.partialorder %v264, %v300
    %vm306 = vcmp.lt.f32.partialorder %v266, %v303
    %vm307 = vcmp.lt.f32.partialorder %v268, %v303
    %v308 = vsel %vm304, %v262, -inf
    %v309 = vsel %vm305, %v264, -inf
    %v310 = vsel %vm306, %v266, -inf
    %v311 = vsel %vm307, %v268, -inf
    %v312 = vmax.f32 %v308, %v309
    %313 = vmax.xlane.f32.xlu0 %v312
    %v314 = vpop.xlane.xlu0 %313
    %v315 = vmax.f32 %v310, %v311
    %316 = vmax.xlane.f32.xlu0 %v315
    %v317 = vpop.xlane.xlu0 %316
    %vm318 = vcmp.ge.f32.partialorder %v262, %v314
    %vm319 = vcmp.ge.f32.partialorder %v264, %v314
    %vm320 = vcmp.ge.f32.partialorder %v266, %v317
    %vm321 = vcmp.ge.f32.partialorder %v268, %v317
    %v322 = vmax.f32 %v262, 0.0
    %v323 = vmax.f32 %v264, 0.0
    %v324 = vmax.f32 %v266, 0.0
    %v325 = vmax.f32 %v268, 0.0
    %v326 = vpack.c.bf16 %v324, %v322
    %v327 = vpack.c.bf16 %v325, %v323
    %vm328 = vmpackc.low %vm320, %vm318
    %vm329 = vmpackc.low %vm321, %vm319
    %v330 = vsel %vm328, %v326, 0
    %v331 = vsel %vm329, %v327, 0
    %v332 = vld [vmem:[#allocation7] sm:$0xf]
    %v333 = vld [vmem:[#allocation7 + $0x4] sm:$0xf]
    %v334 = vld [vmem:[#allocation7 + $0x8] sm:$0xf]
    %v335 = vld [vmem:[#allocation7 + $0xc] sm:$0xf]
    %v336 = vld [vmem:[#allocation7 + $0x10] sm:$0xf]
    %v337 = vld [vmem:[#allocation7 + $0x14] sm:$0xf]
    %v338 = vld [vmem:[#allocation7 + $0x18] sm:$0xf]
    %v339 = vld [vmem:[#allocation7 + $0x1c] sm:$0xf]
    %v340 = vld [vmem:[#allocation7 + $0x20] sm:$0xf]
    %v341 = vld [vmem:[#allocation7 + $0x24] sm:$0xf]
    %v342 = vld [vmem:[#allocation7 + $0x28] sm:$0xf]
    %v343 = vld [vmem:[#allocation7 + $0x2c] sm:$0xf]
    %v344 = vld [vmem:[#allocation7 + $0x30] sm:$0xf]
    %v345 = vld [vmem:[#allocation7 + $0x34] sm:$0xf]
    %v346 = vld [vmem:[#allocation7 + $0x38] sm:$0xf]
    %v347 = vld [vmem:[#allocation7 + $0x3c] sm:$0xf]
    %v348 = vld [vmem:[#allocation7 + $0x40] sm:$0xf]
    %v349 = vld [vmem:[#allocation7 + $0x44] sm:$0xf]
    %v350 = vld [vmem:[#allocation7 + $0x48] sm:$0xf]
    %v351 = vld [vmem:[#allocation7 + $0x4c] sm:$0xf]
    %v352 = vld [vmem:[#allocation7 + $0x50] sm:$0xf]
    %v353 = vld [vmem:[#allocation7 + $0x54] sm:$0xf]
    %v354 = vld [vmem:[#allocation7 + $0x58] sm:$0xf]
    %v355 = vld [vmem:[#allocation7 + $0x5c] sm:$0xf]
    %v356 = vld [vmem:[#allocation7 + $0x60] sm:$0xf]
    %v357 = vld [vmem:[#allocation7 + $0x64] sm:$0xf]
    %v358 = vld [vmem:[#allocation7 + $0x68] sm:$0xf]
    %v359 = vld [vmem:[#allocation7 + $0x6c] sm:$0xf]
    %v360 = vld [vmem:[#allocation7 + $0x70] sm:$0xf]
    %v361 = vld [vmem:[#allocation7 + $0x74] sm:$0xf]
    %v362 = vld [vmem:[#allocation7 + $0x78] sm:$0xf]
    %v363 = vld [vmem:[#allocation7 + $0x7c] sm:$0xf]
    %v396 = vunpack.c.l.b16 %v332
    %v397 = vunpack.c.l.b16 %v333
    %v398 = vunpack.c.l.b16 %v334
    %v399 = vunpack.c.l.b16 %v335
    %v400 = vunpack.c.l.b16 %v336
    %v401 = vunpack.c.l.b16 %v337
    %v402 = vunpack.c.l.b16 %v338
    %v403 = vunpack.c.l.b16 %v339
    %v404 = vunpack.c.l.b16 %v340
    %v405 = vunpack.c.l.b16 %v341
    %v406 = vunpack.c.l.b16 %v342
    %v407 = vunpack.c.l.b16 %v343
    %v408 = vunpack.c.l.b16 %v344
    %v409 = vunpack.c.l.b16 %v345
    %v410 = vunpack.c.l.b16 %v346
    %v411 = vunpack.c.l.b16 %v347
    %v412 = vunpack.c.l.b16 %v348
    %v413 = vunpack.c.l.b16 %v349
    %v414 = vunpack.c.l.b16 %v350
    %v415 = vunpack.c.l.b16 %v351
    %v416 = vunpack.c.l.b16 %v352
    %v417 = vunpack.c.l.b16 %v353
    %v418 = vunpack.c.l.b16 %v354
    %v419 = vunpack.c.l.b16 %v355
    %v420 = vunpack.c.l.b16 %v356
    %v421 = vunpack.c.l.b16 %v357
    %v422 = vunpack.c.l.b16 %v358
    %v423 = vunpack.c.l.b16 %v359
    %v424 = vunpack.c.l.b16 %v360
    %v425 = vunpack.c.l.b16 %v361
    %v426 = vunpack.c.l.b16 %v362
    %v427 = vunpack.c.l.b16 %v363
    %v428 = vpack.c.b16 %v397, %v396
    %v429 = vpack.c.b16 %v399, %v398
    %v430 = vpack.c.b16 %v401, %v400
    %v431 = vpack.c.b16 %v403, %v402
    %v432 = vpack.c.b16 %v405, %v404
    %v433 = vpack.c.b16 %v407, %v406
    %v434 = vpack.c.b16 %v409, %v408
    %v435 = vpack.c.b16 %v411, %v410
    %v436 = vpack.c.b16 %v413, %v412
    %v437 = vpack.c.b16 %v415, %v414
    %v438 = vpack.c.b16 %v417, %v416
    %v439 = vpack.c.b16 %v419, %v418
    %v440 = vpack.c.b16 %v421, %v420
    %v441 = vpack.c.b16 %v423, %v422
    %v442 = vpack.c.b16 %v425, %v424
    %v443 = vpack.c.b16 %v427, %v426
    %460 = vmatprep.subr.bf16.mxu0 0
    %461 = vmatpush1.bf16.msra.mxu0 %v435
    %462 = vmatprep.subr.bf16.mxu0 0
    %463 = vmatpush1.bf16.msra.mxu0 %v434
    %464 = vmatprep.subr.bf16.mxu0 0
    %465 = vmatpush1.bf16.msra.mxu0 %v433
    %466 = vmatprep.subr.bf16.mxu0 0
    %467 = vmatpush1.bf16.msra.mxu0 %v432
    %468 = vmatprep.subr.bf16.mxu0 0
    %469 = vmatpush1.bf16.msra.mxu0 %v431
    %470 = vmatprep.subr.bf16.mxu0 0
    %471 = vmatpush1.bf16.msra.mxu0 %v430
    %472 = vmatprep.subr.bf16.mxu0 0
    %473 = vmatpush1.bf16.msra.mxu0 %v429
    %474 = vmatprep.subr.bf16.mxu0 0
    %475 = vmatpush1.bf16.msra.mxu0 %v428
    %476 = vmatprep.subr.bf16.mxu0 0
    %477 = vmatpush2.bf16.msra.mxu0 %v443
    %478 = vmatprep.subr.bf16.mxu0 0
    %479 = vmatpush2.bf16.msra.mxu0 %v442
    %480 = vmatprep.subr.bf16.mxu0 0
    %481 = vmatpush2.bf16.msra.mxu0 %v441
    %482 = vmatprep.subr.bf16.mxu0 0
    %483 = vmatpush2.bf16.msra.mxu0 %v440
    %484 = vmatprep.subr.bf16.mxu0 0
    %485 = vmatpush2.bf16.msra.mxu0 %v439
    %486 = vmatprep.subr.bf16.mxu0 0
    %487 = vmatpush2.bf16.msra.mxu0 %v438
    %488 = vmatprep.subr.bf16.mxu0 0
    %489 = vmatpush2.bf16.msra.mxu0 %v437
    %490 = vmatprep.subr.bf16.mxu0 0
    %491 = vmatpush2.bf16.msra.mxu0 %v436
    %492 = vmatprep.mubr.bf16.mxu0 %v331
    %493 = vmatmul.mubr.bf16.gmra.mxu0 %v330
    %v494 = vpop.f32.mrf.mxu0
    %v495 = vadd.f32 %v114, %v494
    %v496 = vpop.f32.mrf.mxu0
    %v497 = vpop.f32.mrf.mxu0
    %v498 = vadd.f32 %v114, %v497
    %v499 = vpop.f32.mrf.mxu0
    %500 = vdwg.mxu0
    %v501 = vmul.f32 %v495, %v97
    %v502 = vmul.f32 %v498, %v98
    %v503 = vadd.f32 %v501, %v70
    %v504 = vadd.f32 %v502, %v71
    %505 = vst [vmem:[#allocation8] sm:$0xff] %v503
    %506 = vst [vmem:[#allocation8 + $0x8] sm:$0xff] %v504
    // Predicated region
    $region34: #{tpu_custom_call.1} parent=1 // pred_check
      _
    $region35: #{tpu_custom_call.1} parent=1 // pred_check_branch
      %508 = sbr.rel (0) target = $region37
    $region36: #{tpu_custom_call.1} parent=1 // pred_region
      %s510 = ssub.s32 256, 256
      %511 = vsyncadd [#allocation4], %s510
      %s512 = sshll.u32 [#allocation8], 4
      %s513 = int_to_ptr.vmem [resolvable:$true] %s512
      %518 = dma.vmem_to_hbm [thread:$0]  %s513, 256, %s5, [#allocation4], 128, 128, 8
    $region37: #{tpu_custom_call.1} parent=1 // pred_fallthru
      _
    // Predicated region
    $region38: #{tpu_custom_call.1} parent=1 // pred_check
      _
    $region39: #{tpu_custom_call.1} parent=1 // pred_check_branch
      %520 = sbr.rel (0) target = $region41
    $region40: #{tpu_custom_call.1} parent=1 // pred_region
      %521 = dma.done [#allocation4], 256
    $region41: #{tpu_custom_call.1} parent=1 // pred_fallthru
      _
    %522 = vsyncpa [#allocation3], 1
    %523 = vsyncpa [#allocation6], 1
    %524 = vsyncpa [#allocation4], 1

</llo_original>
